<compile_context>
chip_gen: v6e
topology: v6e:2x2x1
jax: 0.10.0
libtpu: 0.0.40
codegen_flags: <defaults>
</compile_context>

<pallas_src>
import functools

import numpy as np
import jax
import jax.numpy as jnp
from jax.experimental import pallas as pl
from jax.experimental.pallas import tpu as pltpu


# ----------------------------------------------------------------------------
# pltpu.roll direction probe (cached).  We need "result[p] = x[(p + d) % n]";
# the probe pins down the sign convention so the kernel is robust either way.
# ----------------------------------------------------------------------------
_ROLL_SIGN = None


def _roll_probe_kernel(x_ref, o_ref):
    o_ref[...] = pltpu.roll(x_ref[...], 1, axis=1)


def _detect_roll_sign():
    global _ROLL_SIGN
    if _ROLL_SIGN is None:
        with jax.ensure_compile_time_eval():
            x = jnp.tile(jnp.arange(128, dtype=jnp.float32)[None, :], (8, 1))
            r = pl.pallas_call(
                _roll_probe_kernel,
                out_shape=jax.ShapeDtypeStruct((8, 128), jnp.float32),
            )(x)
            # numpy convention: roll(x, 1)[..., 1] == x[..., 0] == 0
            _ROLL_SIGN = -1 if float(r[0, 1]) == 0.0 else 1
    return _ROLL_SIGN


# ----------------------------------------------------------------------------
# Fused ToRGB kernel (one batch element per grid step)
# ----------------------------------------------------------------------------
def _to_rgb_kernel(x_ref, m_ref,
                   dw1_ref, pw1_ref,
                   dwa_ref, pwa_ref, dwb_ref, pwb_ref,
                   *rest, H, W, has_skip, roll_sign):
    """Feature maps are (C, Lp): flattened padded pixel grid on the lane axis.

    Values at border / zero-tail lanes are don't-care junk throughout; they are
    rebuilt (reflection / zero padding) right before each depthwise conv and
    masked out of the instance-norm statistics, and only interior lanes are
    read back by the wrapper.
    """
    if has_skip:
        wskip_ref, dw2_ref, pw2_ref, dw3_ref, pw3_ref, o_ref = rest
    else:
        wskip_ref = None
        dw2_ref, pw2_ref, dw3_ref, pw3_ref, o_ref = rest

    Wp = W + 2
    inv_n = 1.0 / float(H * W)

    xp = x_ref[0]                       # (Cin, Lp) reflection-padded input, flat
    Lp = xp.shape[1]
    mk = m_ref[...]                     # (5, Lp) f32 masks
    m_int, m_left, m_right, m_top, m_bot = (mk[i:i + 1, :] for i in range(5))

    def shift_flat(y, d):
        # result[p] = y[(p + d) % Lp]; wrap only corrupts discarded lanes.
        if d == 0:
            return y
        return pltpu.roll(y, (roll_sign * d) % Lp, axis=1)

    def depthwise3x3(y, dw):
        # y: (C, Lp) flat padded map with a valid 1-pixel border; dw: (C, 9).
        acc = None
        for ki in range(3):
            for kj in range(3):
                d = (ki - 1) * Wp + (kj - 1)
                t = ki * 3 + kj
                term = shift_flat(y, d) * dw[:, t:t + 1]
                acc = term if acc is None else acc + term
        return acc                      # valid at interior lanes

    def pointwise(y, w):                # 1x1 conv: (Cout, Cin) @ (Cin, Lp) on MXU
        return jnp.dot(w, y, preferred_element_type=jnp.float32)

    def inst_norm(y):                   # InstanceNorm2d(affine=False), interior stats
        mu = jnp.sum(y * m_int, axis=1, keepdims=True) * inv_n
        c = y - mu
        var = jnp.sum(c * c * m_int, axis=1, keepdims=True) * inv_n
        return c * jax.lax.rsqrt(var + 1e-5)

    def reflect_fix(y):                 # rebuild ReflectionPad2d(1) border in-register
        yc = (m_left * shift_flat(y, 2) + m_right * shift_flat(y, -2)
              + (1.0 - m_left - m_right) * y)
        return (m_top * shift_flat(yc, 2 * Wp) + m_bot * shift_flat(yc, -2 * Wp)
                + (1.0 - m_top - m_bot) * yc)

    def zero_fix(y):                    # rebuild zero-padding border (padding=1)
        return y * m_int

    # ---- model1: ReflectionPad2d(1) + SeparableConv2d(Cin->nc, 3) + Tanh ----
    out1 = jnp.tanh(pointwise(depthwise3x3(xp, dw1_ref[...]), pw1_ref[...]))

    # ---- model3 -------------------------------------------------------------
    # XceptionBlock(Cin, ngf, reps=2, start_with_relu=False):
    #   [Pad, SepConv(Cin->ngf), IN, ReLU, Pad, SepConv(ngf->ngf), IN] + skip
    h = inst_norm(pointwise(depthwise3x3(xp, dwa_ref[...]), pwa_ref[...]))
    h = jnp.maximum(h, 0.0)
    h = inst_norm(pointwise(depthwise3x3(reflect_fix(h), dwb_ref[...]),
                            pwb_ref[...]))
    if has_skip:                        # 1x1 conv + InstanceNorm skip branch
        h = h + inst_norm(pointwise(xp, wskip_ref[...]))
    else:                               # identity skip (in_filters == out_filters)
        h = h + xp
    # SeparableConv2d(ngf -> ngf//2, 3, stride=1, padding=1 zeros) + IN + ReLU
    h = inst_norm(pointwise(depthwise3x3(zero_fix(h), dw2_ref[...]), pw2_ref[...]))
    h = jnp.maximum(h, 0.0)
    # ReflectionPad2d(1) + SeparableConv2d(ngf//2 -> nc, 3) + Tanh
    out3 = jnp.tanh(pointwise(depthwise3x3(reflect_fix(h), dw3_ref[...]),
                              pw3_ref[...]))

    o_ref[0] = out1 + out3              # lane-dense (nc, Lp) store


# ----------------------------------------------------------------------------
# Wrapper (layout plumbing only: one input pad, masks, final ring slice)
# ----------------------------------------------------------------------------
def to_rgb_forward(x, params):
    """ToRGB.forward.  x: (B, n_feature, H, W) float32 NCHW -> (B, nc, H, W)."""
    B, Cin, H, W = x.shape
    Hp, Wp = H + 2, W + 2
    L = Hp * Wp
    Lp = pl.cdiv(L, 128) * 128          # lane-dense flat length
    nc = params["pw1"].shape[0]
    has_skip = "wskip" in params
    roll_sign = _detect_roll_sign()

    # single reflection pad of the input (shared by model1 and the first
    # Xception sepconv); all later pads are rebuilt in-register in the kernel.
    xp = jnp.pad(x, ((0, 0), (0, 0), (1, 1), (1, 1)), mode="reflect")
    xp = jnp.pad(xp.reshape(B, Cin, L), ((0, 0), (0, 0), (0, Lp - L)))

    # interior / border masks over the flat padded grid (host-side constants)
    idx = np.arange(Lp)
    col, row, valid = idx % Wp, idx // Wp, idx < L
    masks = jnp.asarray(np.stack([
        valid & (col >= 1) & (col <= W) & (row >= 1) & (row <= H),  # interior
        valid & (col == 0),                                          # left col
        valid & (col == Wp - 1),                                     # right col
        valid & (row == 0),                                          # top row
        valid & (row == Hp - 1),                                     # bottom row
    ]).astype(np.float32))

    weights = [params["dw1"], params["pw1"], params["dwa"], params["pwa"],
               params["dwb"], params["pwb"]]
    if has_skip:
        weights.append(params["wskip"])
    weights += [params["dw2"], params["pw2"], params["dw3"], params["pw3"]]

    in_specs = [pl.BlockSpec((1, Cin, Lp), lambda b: (b, 0, 0)),
                pl.BlockSpec((5, Lp), lambda b: (0, 0))]
    in_specs += [pl.BlockSpec(w.shape, lambda b: (0, 0)) for w in weights]

    out = pl.pallas_call(
        functools.partial(_to_rgb_kernel, H=H, W=W, has_skip=has_skip,
                          roll_sign=roll_sign),
        out_shape=jax.ShapeDtypeStruct((B, nc, Lp), jnp.float32),
        grid_spec=pltpu.PrefetchScalarGridSpec(
            num_scalar_prefetch=0,
            grid=(B,),
            in_specs=in_specs,
            out_specs=pl.BlockSpec((1, nc, Lp), lambda b: (b, 0, 0)),
        ),
        compiler_params=pltpu.CompilerParams(
            dimension_semantics=("parallel",)),
    )(xp, masks, *weights)

    # drop the flat tail + the 1-pixel padding ring (cheap XLA slice/reshape).
    return out[:, :, :L].reshape(B, nc, Hp, Wp)[:, :, 1:-1, 1:-1]


# ----------------------------------------------------------------------------
# Parameters for ToRGB(n_feature, ngf, channel); all convs are bias=False.
# Depthwise 3x3 weights stored as (C, 9); 1x1 / pointwise weights as (Cout, Cin).
# ----------------------------------------------------------------------------
def init_to_rgb_params(key, n_feature, ngf, channel):
    ks = iter(jax.random.split(key, 16))

    def nrm(shape, std=0.1):
        return std * jax.random.normal(next(ks), shape, jnp.float32)

    p = {
        # model1: SeparableConv2d(n_feature, channel, 3)          (+ Tanh)
        "dw1": nrm((n_feature, 9)), "pw1": nrm((channel, n_feature)),
        # model3 XceptionBlock sepconv A (n_feature->ngf) and B (ngf->ngf)
        "dwa": nrm((n_feature, 9)), "pwa": nrm((ngf, n_feature)),
        "dwb": nrm((ngf, 9)), "pwb": nrm((ngf, ngf)),
        # model3 SeparableConv2d(ngf, ngf//2, 3, 1, 1)            (+ IN + ReLU)
        "dw2": nrm((ngf, 9)), "pw2": nrm((ngf // 2, ngf)),
        # model3 SeparableConv2d(ngf//2, channel, 3)              (+ Tanh)
        "dw3": nrm((ngf // 2, 9)), "pw3": nrm((channel, ngf // 2)),
    }
    if ngf != n_feature:
        p["wskip"] = nrm((ngf, n_feature))   # XceptionBlock 1x1 skip conv
    return p


# ----------------------------------------------------------------------------
# Pure-JAX (non-Pallas) reference of the PyTorch forward, for validation.
# ----------------------------------------------------------------------------
def to_rgb_reference(x, params):
    refl = lambda t: jnp.pad(t, ((0, 0), (0, 0), (1, 1), (1, 1)), mode="reflect")
    zero = lambda t: jnp.pad(t, ((0, 0), (0, 0), (1, 1), (1, 1)))

    def dwconv(tp, dw):                      # depthwise 3x3 on a padded map
        H, W = tp.shape[2] - 2, tp.shape[3] - 2
        acc = 0.0
        for ki in range(3):
            for kj in range(3):
                acc = acc + (tp[:, :, ki:ki + H, kj:kj + W]
                             * dw[:, ki * 3 + kj][None, :, None, None])
        return acc

    def pwconv(t, w):                        # 1x1 conv
        return jnp.einsum("oc,bchw->bohw", w, t,
                          precision=jax.lax.Precision.HIGHEST)

    def sepconv(t, dw, pw, pad):
        return pwconv(dwconv(pad(t), dw), pw)

    def inorm(t):
        mu = jnp.mean(t, axis=(2, 3), keepdims=True)
        var = jnp.mean(jnp.square(t - mu), axis=(2, 3), keepdims=True)
        return (t - mu) * jax.lax.rsqrt(var + 1e-5)

    out1 = jnp.tanh(sepconv(x, params["dw1"], params["pw1"], refl))

    h = jnp.maximum(inorm(sepconv(x, params["dwa"], params["pwa"], refl)), 0.0)
    h = inorm(sepconv(h, params["dwb"], params["pwb"], refl))
    skip = inorm(pwconv(x, params["wskip"])) if "wskip" in params else x
    h = h + skip
    h = jnp.maximum(inorm(sepconv(h, params["dw2"], params["pw2"], zero)), 0.0)
    out3 = jnp.tanh(sepconv(h, params["dw3"], params["pw3"], refl))
    return out1 + out3


# ----------------------------------------------------------------------------
if __name__ == "__main__":
    B, n_feature, ngf, channel = 2, 32, 16, 3
    H = W = 16

    _detect_roll_sign()                       # pre-warm probe outside jit

    key = jax.random.PRNGKey(0)
    kp, kx = jax.random.split(key)
    params = init_to_rgb_params(kp, n_feature, ngf, channel)
    x = jax.random.normal(kx, (B, n_feature, H, W), jnp.float32)

    fwd = jax.jit(to_rgb_forward)
    y = jax.block_until_ready(fwd(x, params))

    assert y.shape == (B, channel, H, W), y.shape
    assert bool(jnp.all(jnp.isfinite(y)))
    assert bool(jnp.all(jnp.abs(y) <= 2.0 + 1e-5))     # tanh + tanh range

    # numerical check against the pure-JAX reference of the PyTorch forward
    y_ref = to_rgb_reference(x, params)
    err = float(jnp.max(jnp.abs(y - y_ref)))
    assert err < 5e-2, f"max abs error vs reference: {err}"

    print("KERNEL_OK")
</pallas_src>

<mosaic_0001>
module attributes {stable_mosaic.version = 11 : i64} {
  func.func @_roll_probe_kernel(%arg0: memref<8x128xf32, #tpu.memory_space<vmem>>, %arg1: memref<8x128xf32, #tpu.memory_space<vmem>>) attributes {dimension_semantics = [], scalar_prefetch = 0 : i64, scratch_operands = 0 : i64, tpu.core_type = #tpu.core_type<tc>} {
    %c0 = arith.constant 0 : index
    %c0_0 = arith.constant 0 : index
    %0 = vector.load %arg0[%c0, %c0_0] : memref<8x128xf32, #tpu.memory_space<vmem>>, vector<8x128xf32>
    %c1_i32 = arith.constant 1 : i32
    %1 = tpu.dynamic_rotate %0 by %c1_i32 dim 1 : vector<8x128xf32>, i32 -> vector<8x128xf32>
    %c0_1 = arith.constant 0 : index
    %c0_2 = arith.constant 0 : index
    %2 = vector.load %arg1[%c0_1, %c0_2] : memref<8x128xf32, #tpu.memory_space<vmem>>, vector<8x128xf32>
    tpu.vector_store %arg1[%c0_1, %c0_2], %1 {strides = array<i32>} : memref<8x128xf32, #tpu.memory_space<vmem>>, vector<8x128xf32>,
    return
  }
}

</mosaic_0001>

<llo_original>
// kernel: tpu_custom_call.1
$region0: #{tpu_custom_call.1}
  #allocation0 [shape = 'u32[]', space=smem, size = 0x4, offset = 0x4, fixed_abs, tag = 'smem constant byte address 0x4 - core index']
  #allocation1 [shape = 'u32[144,128]{1,0:T(1,128)}', space=vmem, size = 0x12000, scoped, tag = 'internal scratch']
  %s0 = inlined_call_operand.hbm [shape: f32[8,128], index: 0, kind: input, shape index: {}]
  %s1 = inlined_call_operand.hbm [shape: f32[8,128], index: 1, kind: output, shape index: {}]
  %s2 = sld [smem:[#allocation0]]
  $region18: #{tpu_custom_call.1} parent=0
    _
  %s4 = ssub.s32 1, %s2
  %s5 = scalar_select 0, %s4, %s2
  $region1: #{tpu_custom_call.1} parent=0
    #allocation2 [shape = 'u8[4096]{0}', space=vmem, size = 0x1000, scoped, tag = 'input window, operand 0, single buffered']
    #allocation3 [shape = 's32[1]{0}', space=sflag, size = 0x4, scoped, tag = 'scoped memory for tpu_custom_call.1']
    #allocation4 [shape = 's32[1]{0}', space=sflag, size = 0x4, scoped, tag = 'scoped memory for tpu_custom_call.1']
    #allocation5 [shape = 'u8[4096]{0}', space=vmem, size = 0x1000, scoped, tag = 'output window, operand 0, single buffered']
    %6 = vsyncpa [#allocation3], 0
    %7 = vsyncpa [#allocation4], 0
    // Predicated region
    $region2: #{tpu_custom_call.1} parent=1 // pred_check
      _
    $region3: #{tpu_custom_call.1} parent=1 // pred_check_branch
      %9 = sbr.rel (0) target = $region5
    $region4: #{tpu_custom_call.1} parent=1 // pred_region
      %s11 = ssub.s32 128, 128
      %12 = vsyncadd [#allocation3], %s11
      %s14 = sshll.u32 [#allocation2], 4
      %s15 = int_to_ptr.vmem [resolvable:$true] %s14
      %17 = dma.hbm_to_vmem [thread:$0]  %s0, 128, %s15, [#allocation3]
    $region5: #{tpu_custom_call.1} parent=1 // pred_fallthru
      _
    // Predicated region
    $region6: #{tpu_custom_call.1} parent=1 // pred_check
      _
    $region7: #{tpu_custom_call.1} parent=1 // pred_check_branch
      %19 = sbr.rel (0) target = $region9
    $region8: #{tpu_custom_call.1} parent=1 // pred_region
      %20 = dma.done [#allocation3], 128
    $region9: #{tpu_custom_call.1} parent=1 // pred_fallthru
      _
    %v21 = vld [vmem:[#allocation2] sm:$0xff]
    %22 = vrot.lane.b32.xlu0 %v21, 1
    %v23 = vpop.permute.xlu0 %22
    %24 = vst [vmem:[#allocation5] sm:$0xff] %v23
    // Predicated region
    $region10: #{tpu_custom_call.1} parent=1 // pred_check
      _
    $region11: #{tpu_custom_call.1} parent=1 // pred_check_branch
      %26 = sbr.rel (0) target = $region13
    $region12: #{tpu_custom_call.1} parent=1 // pred_region
      %s28 = ssub.s32 128, 128
      %29 = vsyncadd [#allocation4], %s28
      %s31 = sshll.u32 [#allocation5], 4
      %s32 = int_to_ptr.vmem [resolvable:$true] %s31
      %34 = dma.vmem_to_hbm [thread:$0]  %s32, 128, %s1, [#allocation4]
    $region13: #{tpu_custom_call.1} parent=1 // pred_fallthru
      _
    // Predicated region
    $region14: #{tpu_custom_call.1} parent=1 // pred_check
      _
    $region15: #{tpu_custom_call.1} parent=1 // pred_check_branch
      %36 = sbr.rel (0) target = $region17
    $region16: #{tpu_custom_call.1} parent=1 // pred_region
      %37 = dma.done [#allocation4], 128
    $region17: #{tpu_custom_call.1} parent=1 // pred_fallthru
      _
    %38 = vsyncpa [#allocation3], 1
    %39 = vsyncpa [#allocation4], 1

</llo_original>
